<compile_context>
chip_gen: v7x
topology: tpu7x:2x2x1
jax: 0.10.0
libtpu: 0.0.40
codegen_flags: <defaults>
</compile_context>

<pallas_src>
import jax
import jax.numpy as jnp
from jax.experimental import pallas as pl
from jax.experimental.pallas import tpu as pltpu

# ---- static problem sizes implied by the module (Linear(48, O) => input 3x28x28) ----
N = 2                       # batch
C_IN, C_OUT, K = 3, 3, 5    # Conv2d(3, 3, 5)
H = W = 28                  # 28 -> conv 24 -> pool(6,6) 4 ; 3*4*4 = 48 fc inputs
H_CONV = H - K + 1          # 24
POOL = 6
H_POOL = H_CONV // POOL     # 4
N_POOL_POS = H_POOL * H_POOL        # 16 pooled spatial positions
N_WIN = POOL * POOL                 # 36 offsets inside a pooling window
PATCH = C_IN * K * K                # 75
FEAT = C_OUT * N_POOL_POS           # 48  (== fc in_features)
OUTPUTS = 10


def color_classifier_kernel(p_ref, wbig_ref, b48_ref, wf_ref, bf_ref, out_ref):
    n = out_ref.shape[0]  # static batch size

    # --- conv(5x5) as one block-diagonal bf16 MXU matmul over im2col patches + bias + relu ---
    # p_ref: (36*n, 1200) bf16, wbig_ref: (1200, 48) bf16  ->  conv: (36*n, 48) f32
    conv = jnp.dot(p_ref[...], wbig_ref[...], preferred_element_type=jnp.float32)
    conv = jnp.maximum(conv + b48_ref[...], 0.0)

    # --- MaxPool2d(6,6): rows are ordered (window_offset d, sample s) = d*n + s, d in [0,36).
    # Pairwise max tree (6 levels); all but the last two slice boundaries are 8-sublane aligned.
    a = jnp.maximum(conv[0:16 * n, :], conv[16 * n:32 * n, :])   # d   vs d+16
    tail = conv[32 * n:36 * n, :]                                # d = 32..35
    b = jnp.maximum(a[0:8 * n, :], a[8 * n:16 * n, :])           # +8
    c = jnp.maximum(b[0:4 * n, :], b[4 * n:8 * n, :])            # +4
    c = jnp.maximum(c, tail)                                     # +32
    e = jnp.maximum(c[0:2 * n, :], c[2 * n:4 * n, :])            # +2
    pooled = jnp.maximum(e[0:n, :], e[n:2 * n, :])               # +1  -> (n, 48)

    # --- flatten is already encoded in the column order (co*16 + ph*4 + pw); fc + relu ---
    fc = jnp.dot(pooled.astype(wf_ref.dtype), wf_ref[...],
                 preferred_element_type=jnp.float32) + bf_ref[...]
    out_ref[...] = jnp.maximum(fc, 0.0).astype(out_ref.dtype)


def pack_params(Wc, bc, Wf, bf):
    """Pack weights ONCE at parameter-load time (hoisted out of the per-forward path).

    w_big is block-diagonal (1200, 48): row = pool_pos*75 + (ci*25+kh*5+kw),
    col = co*16 + pool_pos (== PyTorch flatten(C=3,H=4,W=4) feature order).
    """
    wc_flat = Wc.reshape(C_OUT, PATCH)                                   # (co, ci*25+kh*5+kw)
    w_big = jnp.einsum('ck,pq->pkcq', wc_flat,
                       jnp.eye(N_POOL_POS, dtype=Wc.dtype))              # (16,75,3,16)
    w_big = w_big.reshape(N_POOL_POS * PATCH, FEAT).astype(jnp.bfloat16)  # (1200,48)
    b48 = jnp.repeat(bc, N_POOL_POS).reshape(1, FEAT).astype(jnp.float32)  # (1,48)
    wf_mat = Wf.T.astype(jnp.bfloat16)                                   # (48,O)
    bf_mat = bf.reshape(1, -1).astype(jnp.float32)                       # (1,O)
    return w_big, b48, wf_mat, bf_mat


@jax.jit
def color_classifier_forward(x, w_big, b48, wf_mat, bf_mat):
    """x: (N, 3, 28, 28) NCHW f32; packed weights from pack_params()."""
    n = x.shape[0]
    outputs = wf_mat.shape[1]

    # ---- im2col glue: build the UNPADDED (36*n, 1200) bf16 patch matrix in final row order ----
    # row = (dh*6 + dw)*n + s ; col = (ph*4 + pw)*75 + (ci*25 + kh*5 + kw)
    cols = [x[:, ci, kh:kh + H_CONV, kw:kw + H_CONV]
            for ci in range(C_IN) for kh in range(K) for kw in range(K)]
    patches = jnp.stack(cols, axis=-1).astype(jnp.bfloat16)              # (n,24,24,75)
    patches = patches.reshape(n, H_POOL, POOL, H_POOL, POOL, PATCH)      # (n,ph,dh,pw,dw,75)
    patches = patches.transpose(2, 4, 0, 1, 3, 5)                        # (dh,dw,n,ph,pw,75)
    p_mat = patches.reshape(N_WIN * n, N_POOL_POS * PATCH)               # (72,1200) bf16

    # ---- Pallas call: whole (tiny) problem in one VMEM block ----
    return pl.pallas_call(
        color_classifier_kernel,
        out_shape=jax.ShapeDtypeStruct((n, outputs), jnp.float32),
        grid=(1,),
        in_specs=[
            pl.BlockSpec(p_mat.shape, lambda i: (0, 0)),
            pl.BlockSpec(w_big.shape, lambda i: (0, 0)),
            pl.BlockSpec(b48.shape, lambda i: (0, 0)),
            pl.BlockSpec(wf_mat.shape, lambda i: (0, 0)),
            pl.BlockSpec(bf_mat.shape, lambda i: (0, 0)),
        ],
        out_specs=pl.BlockSpec((n, outputs), lambda i: (0, 0)),
        compiler_params=pltpu.CompilerParams(dimension_semantics=("arbitrary",)),
    )(p_mat, w_big, b48, wf_mat, bf_mat)


def reference_forward(x, Wc, bc, Wf, bf):
    """Pure-JAX reference reproducing the PyTorch forward (f32)."""
    y = jax.lax.conv_general_dilated(x, Wc, window_strides=(1, 1), padding='VALID',
                                     dimension_numbers=('NCHW', 'OIHW', 'NCHW'))
    y = jnp.maximum(y + bc[None, :, None, None], 0.0)
    y = jax.lax.reduce_window(y, -jnp.inf, jax.lax.max,
                              window_dimensions=(1, 1, POOL, POOL),
                              window_strides=(1, 1, POOL, POOL), padding='VALID')
    y = y.reshape(y.shape[0], -1)                 # PyTorch flatten(1): (N, 3*4*4)
    y = jnp.maximum(y @ Wf.T + bf, 0.0)
    return y


if __name__ == "__main__":
    key = jax.random.PRNGKey(0)
    kx, kwc, kbc, kwf, kbf = jax.random.split(key, 5)
    x = jax.random.normal(kx, (N, C_IN, H, W), jnp.float32)
    Wc = jax.random.normal(kwc, (C_OUT, C_IN, K, K), jnp.float32) * 0.1
    bc = jax.random.normal(kbc, (C_OUT,), jnp.float32) * 0.1
    Wf = jax.random.normal(kwf, (OUTPUTS, FEAT), jnp.float32) * 0.1
    bf = jax.random.normal(kbf, (OUTPUTS,), jnp.float32) * 0.1

    packed = pack_params(Wc, bc, Wf, bf)   # done once, outside the per-forward path
    out = jax.block_until_ready(color_classifier_forward(x, *packed))
    ref = reference_forward(x, Wc, bc, Wf, bf)

    assert out.shape == (N, OUTPUTS)
    assert jnp.allclose(out, ref, atol=2e-2, rtol=2e-2), float(jnp.max(jnp.abs(out - ref)))
    print("KERNEL_OK")
</pallas_src>

<mosaic_0001>
module attributes {stable_mosaic.version = 11 : i64} {
  func.func @color_classifier_kernel(%arg0: i32, %arg1: memref<72x1200xbf16, #tpu.memory_space<vmem>>, %arg2: memref<1200x48xbf16, #tpu.memory_space<vmem>>, %arg3: memref<1x48xf32, #tpu.memory_space<vmem>>, %arg4: memref<48x10xbf16, #tpu.memory_space<vmem>>, %arg5: memref<1x10xf32, #tpu.memory_space<vmem>>, %arg6: memref<2x10xf32, #tpu.memory_space<vmem>>) attributes {dimension_semantics = [#tpu.dimension_semantics<arbitrary>], iteration_bounds = array<i64: 1>, scalar_prefetch = 0 : i64, scratch_operands = 0 : i64, tpu.core_type = #tpu.core_type<tc>, window_params = [{pipeline_mode = #tpu.pipeline_mode<synchronous>, transform_indices = @transform_0, window_bounds = array<i64: 72, 1200>}, {pipeline_mode = #tpu.pipeline_mode<synchronous>, transform_indices = @transform_1, window_bounds = array<i64: 1200, 48>}, {pipeline_mode = #tpu.pipeline_mode<synchronous>, transform_indices = @transform_2, window_bounds = array<i64: 1, 48>}, {pipeline_mode = #tpu.pipeline_mode<synchronous>, transform_indices = @transform_3, window_bounds = array<i64: 48, 10>}, {pipeline_mode = #tpu.pipeline_mode<synchronous>, transform_indices = @transform_4, window_bounds = array<i64: 1, 10>}, {pipeline_mode = #tpu.pipeline_mode<synchronous>, transform_indices = @transform_5, window_bounds = array<i64: 2, 10>}]} {
    %c0 = arith.constant 0 : index
    %c0_0 = arith.constant 0 : index
    %0 = vector.load %arg1[%c0, %c0_0] : memref<72x1200xbf16, #tpu.memory_space<vmem>>, vector<72x1200xbf16>
    %c0_1 = arith.constant 0 : index
    %c0_2 = arith.constant 0 : index
    %1 = vector.load %arg2[%c0_1, %c0_2] : memref<1200x48xbf16, #tpu.memory_space<vmem>>, vector<1200x48xbf16>
    %cst = arith.constant dense<0.000000e+00> : vector<72x48xf32>
    %2 = tpu.matmul %0, %1, %cst {dimension_numbers = #tpu.dot_dimension_numbers<[1], [0], [0], [1], [0, 0, 1, 1], [], []>} : vector<72x1200xbf16>, vector<1200x48xbf16>, vector<72x48xf32> -> vector<72x48xf32>
    %c0_3 = arith.constant 0 : index
    %c0_4 = arith.constant 0 : index
    %3 = vector.load %arg3[%c0_3, %c0_4] : memref<1x48xf32, #tpu.memory_space<vmem>>, vector<1x48xf32>
    %4 = vector.broadcast %3 : vector<1x48xf32> to vector<72x48xf32>
    %5 = arith.addf %2, %4 : vector<72x48xf32>
    %cst_5 = arith.constant 0.000000e+00 : f32
    %6 = vector.broadcast %cst_5 : f32 to vector<72x48xf32>
    %7 = arith.maximumf %5, %6 : vector<72x48xf32>
    %8 = vector.extract_strided_slice %7 {offsets = [0, 0], sizes = [32, 48], strides = [1, 1]} : vector<72x48xf32> to vector<32x48xf32>
    %9 = vector.extract_strided_slice %7 {offsets = [32, 0], sizes = [32, 48], strides = [1, 1]} : vector<72x48xf32> to vector<32x48xf32>
    %10 = arith.maximumf %8, %9 : vector<32x48xf32>
    %11 = vector.extract_strided_slice %7 {offsets = [64, 0], sizes = [8, 48], strides = [1, 1]} : vector<72x48xf32> to vector<8x48xf32>
    %12 = vector.extract_strided_slice %10 {offsets = [0, 0], sizes = [16, 48], strides = [1, 1]} : vector<32x48xf32> to vector<16x48xf32>
    %13 = vector.extract_strided_slice %10 {offsets = [16, 0], sizes = [16, 48], strides = [1, 1]} : vector<32x48xf32> to vector<16x48xf32>
    %14 = arith.maximumf %12, %13 : vector<16x48xf32>
    %15 = vector.extract_strided_slice %14 {offsets = [0, 0], sizes = [8, 48], strides = [1, 1]} : vector<16x48xf32> to vector<8x48xf32>
    %16 = vector.extract_strided_slice %14 {offsets = [8, 0], sizes = [8, 48], strides = [1, 1]} : vector<16x48xf32> to vector<8x48xf32>
    %17 = arith.maximumf %15, %16 : vector<8x48xf32>
    %18 = arith.maximumf %17, %11 : vector<8x48xf32>
    %19 = vector.extract_strided_slice %18 {offsets = [0, 0], sizes = [4, 48], strides = [1, 1]} : vector<8x48xf32> to vector<4x48xf32>
    %20 = vector.extract_strided_slice %18 {offsets = [4, 0], sizes = [4, 48], strides = [1, 1]} : vector<8x48xf32> to vector<4x48xf32>
    %21 = arith.maximumf %19, %20 : vector<4x48xf32>
    %22 = vector.extract_strided_slice %21 {offsets = [0, 0], sizes = [2, 48], strides = [1, 1]} : vector<4x48xf32> to vector<2x48xf32>
    %23 = vector.extract_strided_slice %21 {offsets = [2, 0], sizes = [2, 48], strides = [1, 1]} : vector<4x48xf32> to vector<2x48xf32>
    %24 = arith.maximumf %22, %23 : vector<2x48xf32>
    %25 = arith.truncf %24 : vector<2x48xf32> to vector<2x48xbf16>
    %c0_6 = arith.constant 0 : index
    %c0_7 = arith.constant 0 : index
    %26 = vector.load %arg4[%c0_6, %c0_7] : memref<48x10xbf16, #tpu.memory_space<vmem>>, vector<48x10xbf16>
    %cst_8 = arith.constant dense<0.000000e+00> : vector<2x10xf32>
    %27 = tpu.matmul %25, %26, %cst_8 {dimension_numbers = #tpu.dot_dimension_numbers<[1], [0], [0], [1], [0, 0, 1, 1], [], []>} : vector<2x48xbf16>, vector<48x10xbf16>, vector<2x10xf32> -> vector<2x10xf32>
    %c0_9 = arith.constant 0 : index
    %c0_10 = arith.constant 0 : index
    %28 = vector.load %arg5[%c0_9, %c0_10] : memref<1x10xf32, #tpu.memory_space<vmem>>, vector<1x10xf32>
    %29 = vector.broadcast %28 : vector<1x10xf32> to vector<2x10xf32>
    %30 = arith.addf %27, %29 : vector<2x10xf32>
    %cst_11 = arith.constant 0.000000e+00 : f32
    %31 = vector.broadcast %cst_11 : f32 to vector<2x10xf32>
    %32 = arith.maximumf %30, %31 : vector<2x10xf32>
    %c0_12 = arith.constant 0 : index
    %c0_13 = arith.constant 0 : index
    %33 = vector.load %arg6[%c0_12, %c0_13] : memref<2x10xf32, #tpu.memory_space<vmem>>, vector<2x10xf32>
    tpu.vector_store %arg6[%c0_12, %c0_13], %32 {strides = array<i32>} : memref<2x10xf32, #tpu.memory_space<vmem>>, vector<2x10xf32>,
    return
  }
  func.func @transform_0(%arg0: i32) -> (i32, i32) {
    %c0_i32 = arith.constant 0 : i32
    %c0_i32_0 = arith.constant 0 : i32
    %c0_i32_1 = arith.constant 0 : i32
    return %c0_i32, %c0_i32_0 : i32, i32
  }
  func.func @transform_1(%arg0: i32) -> (i32, i32) {
    %c0_i32 = arith.constant 0 : i32
    %c0_i32_0 = arith.constant 0 : i32
    %c0_i32_1 = arith.constant 0 : i32
    return %c0_i32, %c0_i32_0 : i32, i32
  }
  func.func @transform_2(%arg0: i32) -> (i32, i32) {
    %c0_i32 = arith.constant 0 : i32
    %c0_i32_0 = arith.constant 0 : i32
    %c0_i32_1 = arith.constant 0 : i32
    return %c0_i32, %c0_i32_0 : i32, i32
  }
  func.func @transform_3(%arg0: i32) -> (i32, i32) {
    %c0_i32 = arith.constant 0 : i32
    %c0_i32_0 = arith.constant 0 : i32
    %c0_i32_1 = arith.constant 0 : i32
    return %c0_i32, %c0_i32_0 : i32, i32
  }
  func.func @transform_4(%arg0: i32) -> (i32, i32) {
    %c0_i32 = arith.constant 0 : i32
    %c0_i32_0 = arith.constant 0 : i32
    %c0_i32_1 = arith.constant 0 : i32
    return %c0_i32, %c0_i32_0 : i32, i32
  }
  func.func @transform_5(%arg0: i32) -> (i32, i32) {
    %c0_i32 = arith.constant 0 : i32
    %c0_i32_0 = arith.constant 0 : i32
    %c0_i32_1 = arith.constant 0 : i32
    return %c0_i32, %c0_i32_0 : i32, i32
  }
}

</mosaic_0001>

<llo_original>
// kernel: color_classifier_forward.1
$region0: #{color_classifier_forward.1}
  #allocation0 [shape = 'u32[]', space=smem, size = 0x4, offset = 0x4, fixed_abs, tag = 'smem constant byte address 0x4 - core index']
  #allocation1 [shape = 'u32[144,128]{1,0:T(1,128)}', space=vmem, size = 0x12000, scoped, tag = 'internal scratch']
  %s0 = inlined_call_operand.vmem [shape: bf16[72,1200], index: 0, kind: input, shape index: {}]
  %s1 = inlined_call_operand.vmem [shape: bf16[1200,48], index: 1, kind: input, shape index: {}]
  %s2 = inlined_call_operand.vmem [shape: f32[1,48], index: 2, kind: input, shape index: {}]
  %s3 = inlined_call_operand.vmem [shape: bf16[48,10], index: 3, kind: input, shape index: {}]
  %s4 = inlined_call_operand.vmem [shape: f32[1,10], index: 4, kind: input, shape index: {}]
  %s5 = inlined_call_operand.hbm [shape: f32[2,10], index: 5, kind: output, shape index: {}]
  %s6 = sld [smem:[#allocation0]]
  $region30: #{color_classifier_forward.1} parent=0
    _
  %s8 = ssub.s32 1, %s6
  %s9 = scalar_select 0, %s8, %s6
  $region1: #{color_classifier_forward.1} parent=0
    #allocation2 [shape = 'u8[1024]{0}', space=vmem, size = 0x400, scoped, tag = 'output window, operand 0, single buffered']
    #allocation3 [shape = 's32[1]{0}', space=sflag, size = 0x4, scoped, tag = 'scoped memory for color_classifier_forward.1']
    %10 = vsyncpa [#allocation3], 0
    // Predicated region
    $region2: #{color_classifier_forward.1} parent=1 // pred_check
      _
    $region3: #{color_classifier_forward.1} parent=1 // pred_check_branch
      %12 = sbr.rel (0) target = $region5
    $region4: #{color_classifier_forward.1} parent=1 // pred_region
      _
    $region5: #{color_classifier_forward.1} parent=1 // pred_fallthru
      _
    // Predicated region
    $region6: #{color_classifier_forward.1} parent=1 // pred_check
      _
    $region7: #{color_classifier_forward.1} parent=1 // pred_check_branch
      %14 = sbr.rel (0) target = $region9
    $region8: #{color_classifier_forward.1} parent=1 // pred_region
      _
    $region9: #{color_classifier_forward.1} parent=1 // pred_fallthru
      _
    // Predicated region
    $region10: #{color_classifier_forward.1} parent=1 // pred_check
      _
    $region11: #{color_classifier_forward.1} parent=1 // pred_check_branch
      %16 = sbr.rel (0) target = $region13
    $region12: #{color_classifier_forward.1} parent=1 // pred_region
      _
    $region13: #{color_classifier_forward.1} parent=1 // pred_fallthru
      _
    // Predicated region
    $region14: #{color_classifier_forward.1} parent=1 // pred_check
      _
    $region15: #{color_classifier_forward.1} parent=1 // pred_check_branch
      %18 = sbr.rel (0) target = $region17
    $region16: #{color_classifier_forward.1} parent=1 // pred_region
      _
    $region17: #{color_classifier_forward.1} parent=1 // pred_fallthru
      _
    // Predicated region
    $region18: #{color_classifier_forward.1} parent=1 // pred_check
      _
    $region19: #{color_classifier_forward.1} parent=1 // pred_check_branch
      %20 = sbr.rel (0) target = $region21
    $region20: #{color_classifier_forward.1} parent=1 // pred_region
      _
    $region21: #{color_classifier_forward.1} parent=1 // pred_fallthru
      _
    %v22 = vld [vmem:[%s0] sm:$0xff]
    %v23 = vld [vmem:[%s0 + $0x8] sm:$0xff]
    %v24 = vld [vmem:[%s0 + $0x10] sm:$0xff]
    %v25 = vld [vmem:[%s0 + $0x18] sm:$0xff]
    %v26 = vld [vmem:[%s0 + $0x20] sm:$0xff]
    %v27 = vld [vmem:[%s0 + $0x28] sm:$0xff]
    %v28 = vld [vmem:[%s0 + $0x30] sm:$0xff]
    %v29 = vld [vmem:[%s0 + $0x38] sm:$0xff]
    %v30 = vld [vmem:[%s0 + $0x40] sm:$0xff]
    %v31 = vld [vmem:[%s0 + $0x48] sm:$0xff]
    %v32 = vld [vmem:[%s0 + $0x50] sm:$0xff]
    %v33 = vld [vmem:[%s0 + $0x58] sm:$0xff]
    %v34 = vld [vmem:[%s0 + $0x60] sm:$0xff]
    %v35 = vld [vmem:[%s0 + $0x68] sm:$0xff]
    %v36 = vld [vmem:[%s0 + $0x70] sm:$0xff]
    %v37 = vld [vmem:[%s0 + $0x78] sm:$0xff]
    %v38 = vld [vmem:[%s0 + $0x80] sm:$0xff]
    %v39 = vld [vmem:[%s0 + $0x88] sm:$0xff]
    %v40 = vld [vmem:[%s0 + $0x90] sm:$0xff]
    %v41 = vld [vmem:[%s0 + $0x98] sm:$0xff]
    %v42 = vld [vmem:[%s0 + $0xa0] sm:$0xff]
    %v43 = vld [vmem:[%s0 + $0xa8] sm:$0xff]
    %v44 = vld [vmem:[%s0 + $0xb0] sm:$0xff]
    %v45 = vld [vmem:[%s0 + $0xb8] sm:$0xff]
    %v46 = vld [vmem:[%s0 + $0xc0] sm:$0xff]
    %v47 = vld [vmem:[%s0 + $0xc8] sm:$0xff]
    %v48 = vld [vmem:[%s0 + $0xd0] sm:$0xff]
    %v49 = vld [vmem:[%s0 + $0xd8] sm:$0xff]
    %v50 = vld [vmem:[%s0 + $0xe0] sm:$0xff]
    %v51 = vld [vmem:[%s0 + $0xe8] sm:$0xff]
    %v52 = vld [vmem:[%s0 + $0xf0] sm:$0xff]
    %v53 = vld [vmem:[%s0 + $0xf8] sm:$0xff]
    %v54 = vld [vmem:[%s0 + $0x100] sm:$0xff]
    %v55 = vld [vmem:[%s0 + $0x108] sm:$0xff]
    %v56 = vld [vmem:[%s0 + $0x110] sm:$0xff]
    %v57 = vld [vmem:[%s0 + $0x118] sm:$0xff]
    %v58 = vld [vmem:[%s0 + $0x120] sm:$0xff]
    %v59 = vld [vmem:[%s0 + $0x128] sm:$0xff]
    %v60 = vld [vmem:[%s0 + $0x130] sm:$0xff]
    %v61 = vld [vmem:[%s0 + $0x138] sm:$0xff]
    %v62 = vld [vmem:[%s0 + $0x140] sm:$0xff]
    %v63 = vld [vmem:[%s0 + $0x148] sm:$0xff]
    %v64 = vld [vmem:[%s0 + $0x150] sm:$0xff]
    %v65 = vld [vmem:[%s0 + $0x158] sm:$0xff]
    %v66 = vld [vmem:[%s0 + $0x160] sm:$0xff]
    %v67 = vld [vmem:[%s1] sm:$0xf]
    %v68 = vld [vmem:[%s1 + $0x4] sm:$0xf]
    %v69 = vld [vmem:[%s1 + $0x8] sm:$0xf]
    %v70 = vld [vmem:[%s1 + $0xc] sm:$0xf]
    %v71 = vld [vmem:[%s1 + $0x10] sm:$0xf]
    %v72 = vld [vmem:[%s1 + $0x14] sm:$0xf]
    %v73 = vld [vmem:[%s1 + $0x18] sm:$0xf]
    %v74 = vld [vmem:[%s1 + $0x1c] sm:$0xf]
    %v75 = vld [vmem:[%s1 + $0x20] sm:$0xf]
    %v76 = vld [vmem:[%s1 + $0x24] sm:$0xf]
    %v77 = vld [vmem:[%s1 + $0x28] sm:$0xf]
    %v78 = vld [vmem:[%s1 + $0x2c] sm:$0xf]
    %v79 = vld [vmem:[%s1 + $0x30] sm:$0xf]
    %v80 = vld [vmem:[%s1 + $0x34] sm:$0xf]
    %v81 = vld [vmem:[%s1 + $0x38] sm:$0xf]
    %v82 = vld [vmem:[%s1 + $0x3c] sm:$0xf]
    %v83 = vld [vmem:[%s1 + $0x40] sm:$0xf]
    %v84 = vld [vmem:[%s1 + $0x44] sm:$0xf]
    %v85 = vld [vmem:[%s1 + $0x48] sm:$0xf]
    %v86 = vld [vmem:[%s1 + $0x4c] sm:$0xf]
    %v87 = vld [vmem:[%s1 + $0x50] sm:$0xf]
    %v88 = vld [vmem:[%s1 + $0x54] sm:$0xf]
    %v89 = vld [vmem:[%s1 + $0x58] sm:$0xf]
    %v90 = vld [vmem:[%s1 + $0x5c] sm:$0xf]
    %v91 = vld [vmem:[%s1 + $0x60] sm:$0xf]
    %v92 = vld [vmem:[%s1 + $0x64] sm:$0xf]
    %v93 = vld [vmem:[%s1 + $0x68] sm:$0xf]
    %v94 = vld [vmem:[%s1 + $0x6c] sm:$0xf]
    %v95 = vld [vmem:[%s1 + $0x70] sm:$0xf]
    %v96 = vld [vmem:[%s1 + $0x74] sm:$0xf]
    %v97 = vld [vmem:[%s1 + $0x78] sm:$0xf]
    %v98 = vld [vmem:[%s1 + $0x7c] sm:$0xf]
    %v99 = vld [vmem:[%s1 + $0x80] sm:$0xf]
    %v100 = vld [vmem:[%s1 + $0x84] sm:$0xf]
    %v101 = vld [vmem:[%s1 + $0x88] sm:$0xf]
    %v102 = vld [vmem:[%s1 + $0x8c] sm:$0xf]
    %v103 = vld [vmem:[%s1 + $0x90] sm:$0xf]
    %v104 = vld [vmem:[%s1 + $0x94] sm:$0xf]
    %v105 = vld [vmem:[%s1 + $0x98] sm:$0xf]
    %v106 = vld [vmem:[%s1 + $0x9c] sm:$0xf]
    %v107 = vld [vmem:[%s1 + $0xa0] sm:$0xf]
    %v108 = vld [vmem:[%s1 + $0xa4] sm:$0xf]
    %v109 = vld [vmem:[%s1 + $0xa8] sm:$0xf]
    %v110 = vld [vmem:[%s1 + $0xac] sm:$0xf]
    %v111 = vld [vmem:[%s1 + $0xb0] sm:$0xf]
    %v112 = vld [vmem:[%s1 + $0xb4] sm:$0xf]
    %v113 = vld [vmem:[%s1 + $0xb8] sm:$0xf]
    %v114 = vld [vmem:[%s1 + $0xbc] sm:$0xf]
    %v115 = vld [vmem:[%s1 + $0xc0] sm:$0xf]
    %v116 = vld [vmem:[%s1 + $0xc4] sm:$0xf]
    %v117 = vld [vmem:[%s1 + $0xc8] sm:$0xf]
    %v118 = vld [vmem:[%s1 + $0xcc] sm:$0xf]
    %v119 = vld [vmem:[%s1 + $0xd0] sm:$0xf]
    %v120 = vld [vmem:[%s1 + $0xd4] sm:$0xf]
    %v121 = vld [vmem:[%s1 + $0xd8] sm:$0xf]
    %v122 = vld [vmem:[%s1 + $0xdc] sm:$0xf]
    %v123 = vld [vmem:[%s1 + $0xe0] sm:$0xf]
    %v124 = vld [vmem:[%s1 + $0xe4] sm:$0xf]
    %v125 = vld [vmem:[%s1 + $0xe8] sm:$0xf]
    %v126 = vld [vmem:[%s1 + $0xec] sm:$0xf]
    %v127 = vld [vmem:[%s1 + $0xf0] sm:$0xf]
    %v128 = vld [vmem:[%s1 + $0xf4] sm:$0xf]
    %v129 = vld [vmem:[%s1 + $0xf8] sm:$0xf]
    %v130 = vld [vmem:[%s1 + $0xfc] sm:$0xf]
    %v131 = vld [vmem:[%s1 + $0x100] sm:$0xf]
    %v132 = vld [vmem:[%s1 + $0x104] sm:$0xf]
    %v133 = vld [vmem:[%s1 + $0x108] sm:$0xf]
    %v134 = vld [vmem:[%s1 + $0x10c] sm:$0xf]
    %v135 = vld [vmem:[%s1 + $0x110] sm:$0xf]
    %v136 = vld [vmem:[%s1 + $0x114] sm:$0xf]
    %v137 = vld [vmem:[%s1 + $0x118] sm:$0xf]
    %v138 = vld [vmem:[%s1 + $0x11c] sm:$0xf]
    %v139 = vld [vmem:[%s1 + $0x120] sm:$0xf]
    %v140 = vld [vmem:[%s1 + $0x124] sm:$0xf]
    %v141 = vld [vmem:[%s1 + $0x128] sm:$0xf]
    %v142 = vld [vmem:[%s1 + $0x12c] sm:$0xf]
    %v143 = vld [vmem:[%s1 + $0x130] sm:$0xf]
    %v144 = vld [vmem:[%s1 + $0x134] sm:$0xf]
    %v145 = vld [vmem:[%s1 + $0x138] sm:$0xf]
    %v146 = vld [vmem:[%s1 + $0x13c] sm:$0xf]
    %v147 = vld [vmem:[%s1 + $0x140] sm:$0xf]
    %v148 = vld [vmem:[%s1 + $0x144] sm:$0xf]
    %v149 = vld [vmem:[%s1 + $0x148] sm:$0xf]
    %v150 = vld [vmem:[%s1 + $0x14c] sm:$0xf]
    %v151 = vld [vmem:[%s1 + $0x150] sm:$0xf]
    %v152 = vld [vmem:[%s1 + $0x154] sm:$0xf]
    %v153 = vld [vmem:[%s1 + $0x158] sm:$0xf]
    %v154 = vld [vmem:[%s1 + $0x15c] sm:$0xf]
    %v155 = vld [vmem:[%s1 + $0x160] sm:$0xf]
    %v156 = vld [vmem:[%s1 + $0x164] sm:$0xf]
    %v157 = vld [vmem:[%s1 + $0x168] sm:$0xf]
    %v158 = vld [vmem:[%s1 + $0x16c] sm:$0xf]
    %v159 = vld [vmem:[%s1 + $0x170] sm:$0xf]
    %v160 = vld [vmem:[%s1 + $0x174] sm:$0xf]
    %v161 = vld [vmem:[%s1 + $0x178] sm:$0xf]
    %v162 = vld [vmem:[%s1 + $0x17c] sm:$0xf]
    %v163 = vld [vmem:[%s1 + $0x180] sm:$0xf]
    %v164 = vld [vmem:[%s1 + $0x184] sm:$0xf]
    %v165 = vld [vmem:[%s1 + $0x188] sm:$0xf]
    %v166 = vld [vmem:[%s1 + $0x18c] sm:$0xf]
    %v167 = vld [vmem:[%s1 + $0x190] sm:$0xf]
    %v168 = vld [vmem:[%s1 + $0x194] sm:$0xf]
    %v169 = vld [vmem:[%s1 + $0x198] sm:$0xf]
    %v170 = vld [vmem:[%s1 + $0x19c] sm:$0xf]
    %v171 = vld [vmem:[%s1 + $0x1a0] sm:$0xf]
    %v172 = vld [vmem:[%s1 + $0x1a4] sm:$0xf]
    %v173 = vld [vmem:[%s1 + $0x1a8] sm:$0xf]
    %v174 = vld [vmem:[%s1 + $0x1ac] sm:$0xf]
    %v175 = vld [vmem:[%s1 + $0x1b0] sm:$0xf]
    %v176 = vld [vmem:[%s1 + $0x1b4] sm:$0xf]
    %v177 = vld [vmem:[%s1 + $0x1b8] sm:$0xf]
    %v178 = vld [vmem:[%s1 + $0x1bc] sm:$0xf]
    %v179 = vld [vmem:[%s1 + $0x1c0] sm:$0xf]
    %v180 = vld [vmem:[%s1 + $0x1c4] sm:$0xf]
    %v181 = vld [vmem:[%s1 + $0x1c8] sm:$0xf]
    %v182 = vld [vmem:[%s1 + $0x1cc] sm:$0xf]
    %v183 = vld [vmem:[%s1 + $0x1d0] sm:$0xf]
    %v184 = vld [vmem:[%s1 + $0x1d4] sm:$0xf]
    %v185 = vld [vmem:[%s1 + $0x1d8] sm:$0xf]
    %v186 = vld [vmem:[%s1 + $0x1dc] sm:$0xf]
    %v187 = vld [vmem:[%s1 + $0x1e0] sm:$0xf]
    %v188 = vld [vmem:[%s1 + $0x1e4] sm:$0xf]
    %v189 = vld [vmem:[%s1 + $0x1e8] sm:$0xf]
    %v190 = vld [vmem:[%s1 + $0x1ec] sm:$0xf]
    %v191 = vld [vmem:[%s1 + $0x1f0] sm:$0xf]
    %v192 = vld [vmem:[%s1 + $0x1f4] sm:$0xf]
    %v193 = vld [vmem:[%s1 + $0x1f8] sm:$0xf]
    %v194 = vld [vmem:[%s1 + $0x1fc] sm:$0xf]
    %v195 = vld [vmem:[%s1 + $0x200] sm:$0xf]
    %v196 = vld [vmem:[%s1 + $0x204] sm:$0xf]
    %v197 = vld [vmem:[%s1 + $0x208] sm:$0xf]
    %v198 = vld [vmem:[%s1 + $0x20c] sm:$0xf]
    %v199 = vld [vmem:[%s1 + $0x210] sm:$0xf]
    %v200 = vld [vmem:[%s1 + $0x214] sm:$0xf]
    %v201 = vld [vmem:[%s1 + $0x218] sm:$0xf]
    %v202 = vld [vmem:[%s1 + $0x21c] sm:$0xf]
    %v203 = vld [vmem:[%s1 + $0x220] sm:$0xf]
    %v204 = vld [vmem:[%s1 + $0x224] sm:$0xf]
    %v205 = vld [vmem:[%s1 + $0x228] sm:$0xf]
    %v206 = vld [vmem:[%s1 + $0x22c] sm:$0xf]
    %v207 = vld [vmem:[%s1 + $0x230] sm:$0xf]
    %v208 = vld [vmem:[%s1 + $0x234] sm:$0xf]
    %v209 = vld [vmem:[%s1 + $0x238] sm:$0xf]
    %v210 = vld [vmem:[%s1 + $0x23c] sm:$0xf]
    %v211 = vld [vmem:[%s1 + $0x240] sm:$0xf]
    %v212 = vld [vmem:[%s1 + $0x244] sm:$0xf]
    %v213 = vld [vmem:[%s1 + $0x248] sm:$0xf]
    %v214 = vld [vmem:[%s1 + $0x24c] sm:$0xf]
    %v215 = vld [vmem:[%s1 + $0x250] sm:$0xf]
    %v216 = vld [vmem:[%s1 + $0x254] sm:$0xf]
    %v217 = vld [vmem:[%s2] sm:$0x1]
    %v219 = vlaneseq
    %v220 = vshrl.u32 %v219, 7
    %v221 = vsub.s32 0, %v220
    %v222 = vrot.slane %v217, %v221
    %v269 = vunpack.c.l.b16 %v22
    %v270 = vunpack.c.h.b16 %v22
    %v271 = vunpack.c.l.b16 %v23
    %v272 = vunpack.c.h.b16 %v23
    %v273 = vunpack.c.l.b16 %v24
    %v274 = vunpack.c.h.b16 %v24
    %v275 = vunpack.c.l.b16 %v25
    %v276 = vunpack.c.h.b16 %v25
    %v277 = vunpack.c.l.b16 %v26
    %v278 = vunpack.c.h.b16 %v26
    %v279 = vunpack.c.l.b16 %v27
    %v280 = vunpack.c.h.b16 %v27
    %v281 = vunpack.c.l.b16 %v28
    %v282 = vunpack.c.h.b16 %v28
    %v283 = vunpack.c.l.b16 %v29
    %v284 = vunpack.c.h.b16 %v29
    %v285 = vunpack.c.l.b16 %v30
    %v286 = vunpack.c.h.b16 %v30
    %v287 = vunpack.c.l.b16 %v31
    %v288 = vunpack.c.h.b16 %v31
    %v289 = vunpack.c.l.b16 %v32
    %v290 = vunpack.c.h.b16 %v32
    %v291 = vunpack.c.l.b16 %v33
    %v292 = vunpack.c.h.b16 %v33
    %v293 = vunpack.c.l.b16 %v34
    %v294 = vunpack.c.h.b16 %v34
    %v295 = vunpack.c.l.b16 %v35
    %v296 = vunpack.c.h.b16 %v35
    %v297 = vunpack.c.l.b16 %v36
    %v298 = vunpack.c.h.b16 %v36
    %v299 = vunpack.c.l.b16 %v37
    %v300 = vunpack.c.h.b16 %v37
    %v301 = vunpack.c.l.b16 %v38
    %v302 = vunpack.c.h.b16 %v38
    %v303 = vunpack.c.l.b16 %v39
    %v304 = vunpack.c.h.b16 %v39
    %v305 = vunpack.c.l.b16 %v40
    %v306 = vunpack.c.h.b16 %v40
    %v307 = vunpack.c.l.b16 %v41
    %v308 = vunpack.c.h.b16 %v41
    %v309 = vunpack.c.l.b16 %v42
    %v310 = vunpack.c.h.b16 %v42
    %v311 = vunpack.c.l.b16 %v43
    %v312 = vunpack.c.h.b16 %v43
    %v313 = vunpack.c.l.b16 %v44
    %v314 = vunpack.c.h.b16 %v44
    %v315 = vunpack.c.l.b16 %v45
    %v316 = vunpack.c.h.b16 %v45
    %v317 = vunpack.c.l.b16 %v46
    %v318 = vunpack.c.h.b16 %v46
    %v319 = vunpack.c.l.b16 %v47
    %v320 = vunpack.c.h.b16 %v47
    %v321 = vunpack.c.l.b16 %v48
    %v322 = vunpack.c.h.b16 %v48
    %v323 = vunpack.c.l.b16 %v49
    %v324 = vunpack.c.h.b16 %v49
    %v325 = vunpack.c.l.b16 %v50
    %v326 = vunpack.c.h.b16 %v50
    %v327 = vunpack.c.l.b16 %v51
    %v328 = vunpack.c.h.b16 %v51
    %v329 = vunpack.c.l.b16 %v52
    %v330 = vunpack.c.h.b16 %v52
    %v331 = vunpack.c.l.b16 %v53
    %v332 = vunpack.c.h.b16 %v53
    %v333 = vunpack.c.l.b16 %v54
    %v334 = vunpack.c.h.b16 %v54
    %v335 = vunpack.c.l.b16 %v55
    %v336 = vunpack.c.h.b16 %v55
    %v337 = vunpack.c.l.b16 %v56
    %v338 = vunpack.c.h.b16 %v56
    %v339 = vunpack.c.l.b16 %v57
    %v340 = vunpack.c.h.b16 %v57
    %v341 = vunpack.c.l.b16 %v58
    %v342 = vunpack.c.h.b16 %v58
    %v343 = vunpack.c.l.b16 %v59
    %v344 = vunpack.c.h.b16 %v59
    %v345 = vunpack.c.l.b16 %v60
    %v346 = vunpack.c.h.b16 %v60
    %v347 = vunpack.c.l.b16 %v61
    %v348 = vunpack.c.h.b16 %v61
    %v349 = vunpack.c.l.b16 %v62
    %v350 = vunpack.c.h.b16 %v62
    %v351 = vunpack.c.l.b16 %v63
    %v352 = vunpack.c.h.b16 %v63
    %v353 = vunpack.c.l.b16 %v64
    %v354 = vunpack.c.h.b16 %v64
    %v355 = vunpack.c.l.b16 %v65
    %v356 = vunpack.c.h.b16 %v65
    %v357 = vunpack.c.l.b16 %v66
    %v358 = vunpack.c.h.b16 %v66
    %v359 = vpack.c.b16 %v279, %v269
    %v360 = vpack.c.b16 %v280, %v270
    %v361 = vpack.c.b16 %v281, %v271
    %v362 = vpack.c.b16 %v282, %v272
    %v363 = vpack.c.b16 %v283, %v273
    %v364 = vpack.c.b16 %v284, %v274
    %v365 = vpack.c.b16 %v285, %v275
    %v366 = vpack.c.b16 %v286, %v276
    %v367 = vpack.c.b16 %v287, %v277
    %v368 = vpack.c.b16 %v288, %v278
    %v369 = vpack.c.b16 %v299, %v289
    %v370 = vpack.c.b16 %v300, %v290
    %v371 = vpack.c.b16 %v301, %v291
    %v372 = vpack.c.b16 %v302, %v292
    %v373 = vpack.c.b16 %v303, %v293
    %v374 = vpack.c.b16 %v304, %v294
    %v375 = vpack.c.b16 %v305, %v295
    %v376 = vpack.c.b16 %v306, %v296
    %v377 = vpack.c.b16 %v307, %v297
    %v378 = vpack.c.b16 %v308, %v298
    %v379 = vpack.c.b16 %v319, %v309
    %v380 = vpack.c.b16 %v320, %v310
    %v381 = vpack.c.b16 %v321, %v311
    %v382 = vpack.c.b16 %v322, %v312
    %v383 = vpack.c.b16 %v323, %v313
    %v384 = vpack.c.b16 %v324, %v314
    %v385 = vpack.c.b16 %v325, %v315
    %v386 = vpack.c.b16 %v326, %v316
    %v387 = vpack.c.b16 %v327, %v317
    %v388 = vpack.c.b16 %v328, %v318
    %v389 = vpack.c.b16 %v339, %v329
    %v390 = vpack.c.b16 %v340, %v330
    %v391 = vpack.c.b16 %v341, %v331
    %v392 = vpack.c.b16 %v342, %v332
    %v393 = vpack.c.b16 %v343, %v333
    %v394 = vpack.c.b16 %v344, %v334
    %v395 = vpack.c.b16 %v345, %v335
    %v396 = vpack.c.b16 %v346, %v336
    %v397 = vpack.c.b16 %v347, %v337
    %v398 = vpack.c.b16 %v348, %v338
    %v399 = vpack.c.b16 %v349, %v349
    %v400 = vpack.c.b16 %v350, %v350
    %v401 = vpack.c.b16 %v351, %v351
    %v402 = vpack.c.b16 %v352, %v352
    %v403 = vpack.c.b16 %v353, %v353
    %v404 = vpack.c.b16 %v354, %v354
    %v405 = vpack.c.b16 %v355, %v355
    %v406 = vpack.c.b16 %v356, %v356
    %v407 = vpack.c.b16 %v357, %v357
    %v408 = vpack.c.b16 %v358, %v358
    %v604 = vunpack.c.l.b16 %v67
    %v605 = vunpack.c.l.b16 %v68
    %v606 = vunpack.c.l.b16 %v69
    %v607 = vunpack.c.l.b16 %v70
    %v608 = vunpack.c.l.b16 %v71
    %v609 = vunpack.c.l.b16 %v72
    %v610 = vunpack.c.l.b16 %v73
    %v611 = vunpack.c.l.b16 %v74
    %v612 = vunpack.c.l.b16 %v75
    %v613 = vunpack.c.l.b16 %v76
    %v614 = vunpack.c.l.b16 %v77
    %v615 = vunpack.c.l.b16 %v78
    %v616 = vunpack.c.l.b16 %v79
    %v617 = vunpack.c.l.b16 %v80
    %v618 = vunpack.c.l.b16 %v81
    %v619 = vunpack.c.l.b16 %v82
    %v620 = vunpack.c.l.b16 %v83
    %v621 = vunpack.c.l.b16 %v84
    %v622 = vunpack.c.l.b16 %v85
    %v623 = vunpack.c.l.b16 %v86
    %v624 = vunpack.c.l.b16 %v87
    %v625 = vunpack.c.l.b16 %v88
    %v626 = vunpack.c.l.b16 %v89
    %v627 = vunpack.c.l.b16 %v90
    %v628 = vunpack.c.l.b16 %v91
    %v629 = vunpack.c.l.b16 %v92
    %v630 = vunpack.c.l.b16 %v93
    %v631 = vunpack.c.l.b16 %v94
    %v632 = vunpack.c.l.b16 %v95
    %v633 = vunpack.c.l.b16 %v96
    %v634 = vunpack.c.l.b16 %v97
    %v635 = vunpack.c.l.b16 %v98
    %v636 = vunpack.c.l.b16 %v99
    %v637 = vunpack.c.l.b16 %v100
    %v638 = vunpack.c.l.b16 %v101
    %v639 = vunpack.c.l.b16 %v102
    %v640 = vunpack.c.l.b16 %v103
    %v641 = vunpack.c.l.b16 %v104
    %v642 = vunpack.c.l.b16 %v105
    %v643 = vunpack.c.l.b16 %v106
    %v644 = vunpack.c.l.b16 %v107
    %v645 = vunpack.c.l.b16 %v108
    %v646 = vunpack.c.l.b16 %v109
    %v647 = vunpack.c.l.b16 %v110
    %v648 = vunpack.c.l.b16 %v111
    %v649 = vunpack.c.l.b16 %v112
    %v650 = vunpack.c.l.b16 %v113
    %v651 = vunpack.c.l.b16 %v114
    %v652 = vunpack.c.l.b16 %v115
    %v653 = vunpack.c.l.b16 %v116
    %v654 = vunpack.c.l.b16 %v117
    %v655 = vunpack.c.l.b16 %v118
    %v656 = vunpack.c.l.b16 %v119
    %v657 = vunpack.c.l.b16 %v120
    %v658 = vunpack.c.l.b16 %v121
    %v659 = vunpack.c.l.b16 %v122
    %v660 = vunpack.c.l.b16 %v123
    %v661 = vunpack.c.l.b16 %v124
    %v662 = vunpack.c.l.b16 %v125
    %v663 = vunpack.c.l.b16 %v126
    %v664 = vunpack.c.l.b16 %v127
    %v665 = vunpack.c.l.b16 %v128
    %v666 = vunpack.c.l.b16 %v129
    %v667 = vunpack.c.l.b16 %v130
    %v668 = vunpack.c.l.b16 %v131
    %v669 = vunpack.c.l.b16 %v132
    %v670 = vunpack.c.l.b16 %v133
    %v671 = vunpack.c.l.b16 %v134
    %v672 = vunpack.c.l.b16 %v135
    %v673 = vunpack.c.l.b16 %v136
    %v674 = vunpack.c.l.b16 %v137
    %v675 = vunpack.c.l.b16 %v138
    %v676 = vunpack.c.l.b16 %v139
    %v677 = vunpack.c.l.b16 %v140
    %v678 = vunpack.c.l.b16 %v141
    %v679 = vunpack.c.l.b16 %v142
    %v680 = vunpack.c.l.b16 %v143
    %v681 = vunpack.c.l.b16 %v144
    %v682 = vunpack.c.l.b16 %v145
    %v683 = vunpack.c.l.b16 %v146
    %v684 = vunpack.c.l.b16 %v147
    %v685 = vunpack.c.l.b16 %v148
    %v686 = vunpack.c.l.b16 %v149
    %v687 = vunpack.c.l.b16 %v150
    %v688 = vunpack.c.l.b16 %v151
    %v689 = vunpack.c.l.b16 %v152
    %v690 = vunpack.c.l.b16 %v153
    %v691 = vunpack.c.l.b16 %v154
    %v692 = vunpack.c.l.b16 %v155
    %v693 = vunpack.c.l.b16 %v156
    %v694 = vunpack.c.l.b16 %v157
    %v695 = vunpack.c.l.b16 %v158
    %v696 = vunpack.c.l.b16 %v159
    %v697 = vunpack.c.l.b16 %v160
    %v698 = vunpack.c.l.b16 %v161
    %v699 = vunpack.c.l.b16 %v162
    %v700 = vunpack.c.l.b16 %v163
    %v701 = vunpack.c.l.b16 %v164
    %v702 = vunpack.c.l.b16 %v165
    %v703 = vunpack.c.l.b16 %v166
    %v704 = vunpack.c.l.b16 %v167
    %v705 = vunpack.c.l.b16 %v168
    %v706 = vunpack.c.l.b16 %v169
    %v707 = vunpack.c.l.b16 %v170
    %v708 = vunpack.c.l.b16 %v171
    %v709 = vunpack.c.l.b16 %v172
    %v710 = vunpack.c.l.b16 %v173
    %v711 = vunpack.c.l.b16 %v174
    %v712 = vunpack.c.l.b16 %v175
    %v713 = vunpack.c.l.b16 %v176
    %v714 = vunpack.c.l.b16 %v177
    %v715 = vunpack.c.l.b16 %v178
    %v716 = vunpack.c.l.b16 %v179
    %v717 = vunpack.c.l.b16 %v180
    %v718 = vunpack.c.l.b16 %v181
    %v719 = vunpack.c.l.b16 %v182
    %v720 = vunpack.c.l.b16 %v183
    %v721 = vunpack.c.l.b16 %v184
    %v722 = vunpack.c.l.b16 %v185
    %v723 = vunpack.c.l.b16 %v186
    %v724 = vunpack.c.l.b16 %v187
    %v725 = vunpack.c.l.b16 %v188
    %v726 = vunpack.c.l.b16 %v189
    %v727 = vunpack.c.l.b16 %v190
    %v728 = vunpack.c.l.b16 %v191
    %v729 = vunpack.c.l.b16 %v192
    %v730 = vunpack.c.l.b16 %v193
    %v731 = vunpack.c.l.b16 %v194
    %v732 = vunpack.c.l.b16 %v195
    %v733 = vunpack.c.l.b16 %v196
    %v734 = vunpack.c.l.b16 %v197
    %v735 = vunpack.c.l.b16 %v198
    %v736 = vunpack.c.l.b16 %v199
    %v737 = vunpack.c.l.b16 %v200
    %v738 = vunpack.c.l.b16 %v201
    %v739 = vunpack.c.l.b16 %v202
    %v740 = vunpack.c.l.b16 %v203
    %v741 = vunpack.c.l.b16 %v204
    %v742 = vunpack.c.l.b16 %v205
    %v743 = vunpack.c.l.b16 %v206
    %v744 = vunpack.c.l.b16 %v207
    %v745 = vunpack.c.l.b16 %v208
    %v746 = vunpack.c.l.b16 %v209
    %v747 = vunpack.c.l.b16 %v210
    %v748 = vunpack.c.l.b16 %v211
    %v749 = vunpack.c.l.b16 %v212
    %v750 = vunpack.c.l.b16 %v213
    %v751 = vunpack.c.l.b16 %v214
    %v752 = vunpack.c.l.b16 %v215
    %v753 = vunpack.c.l.b16 %v216
    %v754 = vpack.c.b16 %v605, %v604
    %v755 = vpack.c.b16 %v607, %v606
    %v756 = vpack.c.b16 %v609, %v608
    %v757 = vpack.c.b16 %v611, %v610
    %v758 = vpack.c.b16 %v613, %v612
    %v759 = vpack.c.b16 %v615, %v614
    %v760 = vpack.c.b16 %v617, %v616
    %v761 = vpack.c.b16 %v619, %v618
    %v762 = vpack.c.b16 %v621, %v620
    %v763 = vpack.c.b16 %v623, %v622
    %v764 = vpack.c.b16 %v625, %v624
    %v765 = vpack.c.b16 %v627, %v626
    %v766 = vpack.c.b16 %v629, %v628
    %v767 = vpack.c.b16 %v631, %v630
    %v768 = vpack.c.b16 %v633, %v632
    %v769 = vpack.c.b16 %v635, %v634
    %v770 = vpack.c.b16 %v637, %v636
    %v771 = vpack.c.b16 %v639, %v638
    %v772 = vpack.c.b16 %v641, %v640
    %v773 = vpack.c.b16 %v643, %v642
    %v774 = vpack.c.b16 %v645, %v644
    %v775 = vpack.c.b16 %v647, %v646
    %v776 = vpack.c.b16 %v649, %v648
    %v777 = vpack.c.b16 %v651, %v650
    %v778 = vpack.c.b16 %v653, %v652
    %v779 = vpack.c.b16 %v655, %v654
    %v780 = vpack.c.b16 %v657, %v656
    %v781 = vpack.c.b16 %v659, %v658
    %v782 = vpack.c.b16 %v661, %v660
    %v783 = vpack.c.b16 %v663, %v662
    %v784 = vpack.c.b16 %v665, %v664
    %v785 = vpack.c.b16 %v667, %v666
    %v786 = vpack.c.b16 %v669, %v668
    %v787 = vpack.c.b16 %v671, %v670
    %v788 = vpack.c.b16 %v673, %v672
    %v789 = vpack.c.b16 %v675, %v674
    %v790 = vpack.c.b16 %v677, %v676
    %v791 = vpack.c.b16 %v679, %v678
    %v792 = vpack.c.b16 %v681, %v680
    %v793 = vpack.c.b16 %v683, %v682
    %v794 = vpack.c.b16 %v685, %v684
    %v795 = vpack.c.b16 %v687, %v686
    %v796 = vpack.c.b16 %v689, %v688
    %v797 = vpack.c.b16 %v691, %v690
    %v798 = vpack.c.b16 %v693, %v692
    %v799 = vpack.c.b16 %v695, %v694
    %v800 = vpack.c.b16 %v697, %v696
    %v801 = vpack.c.b16 %v699, %v698
    %v802 = vpack.c.b16 %v701, %v700
    %v803 = vpack.c.b16 %v703, %v702
    %v804 = vpack.c.b16 %v705, %v704
    %v805 = vpack.c.b16 %v707, %v706
    %v806 = vpack.c.b16 %v709, %v708
    %v807 = vpack.c.b16 %v711, %v710
    %v808 = vpack.c.b16 %v713, %v712
    %v809 = vpack.c.b16 %v715, %v714
    %v810 = vpack.c.b16 %v717, %v716
    %v811 = vpack.c.b16 %v719, %v718
    %v812 = vpack.c.b16 %v721, %v720
    %v813 = vpack.c.b16 %v723, %v722
    %v814 = vpack.c.b16 %v725, %v724
    %v815 = vpack.c.b16 %v727, %v726
    %v816 = vpack.c.b16 %v729, %v728
    %v817 = vpack.c.b16 %v731, %v730
    %v818 = vpack.c.b16 %v733, %v732
    %v819 = vpack.c.b16 %v735, %v734
    %v820 = vpack.c.b16 %v737, %v736
    %v821 = vpack.c.b16 %v739, %v738
    %v822 = vpack.c.b16 %v741, %v740
    %v823 = vpack.c.b16 %v743, %v742
    %v824 = vpack.c.b16 %v745, %v744
    %v825 = vpack.c.b16 %v747, %v746
    %v826 = vpack.c.b16 %v749, %v748
    %v827 = vpack.c.b16 %v751, %v750
    %v828 = vpack.c.b16 %v753, %v752
    %vm904 = vcmask 392192
    %v906 = vsel %vm904, %v368, 0
    %v909 = vsel %vm904, %v378, 0
    %v912 = vsel %vm904, %v388, 0
    %v915 = vsel %vm904, %v398, 0
    %v918 = vsel %vm904, %v408, 0
    %920 = vmatprep.subr.bf16.mxu0 0
    %921 = vmatpush1.bf16.msra.mxu0 %v754
    %922 = vmatprep.subr.bf16.mxu0 0
    %923 = vmatpush1.bf16.msra.mxu0 %v755
    %924 = vmatprep.subr.bf16.mxu0 0
    %925 = vmatpush1.bf16.msra.mxu0 %v756
    %926 = vmatprep.subr.bf16.mxu0 0
    %927 = vmatpush1.bf16.msra.mxu0 %v757
    %928 = vmatprep.subr.bf16.mxu0 0
    %929 = vmatpush1.bf16.msra.mxu0 %v758
    %930 = vmatprep.subr.bf16.mxu0 0
    %931 = vmatpush1.bf16.msra.mxu0 %v759
    %932 = vmatprep.subr.bf16.mxu0 0
    %933 = vmatpush1.bf16.msra.mxu0 %v760
    %934 = vmatprep.subr.bf16.mxu0 0
    %935 = vmatpush1.bf16.msra.mxu0 %v761
    %936 = vmatprep.subr.bf16.mxu0 0
    %937 = vmatpush1.bf16.msra.mxu0 %v762
    %938 = vmatprep.subr.bf16.mxu0 0
    %939 = vmatpush1.bf16.msra.mxu0 %v763
    %940 = vmatprep.subr.bf16.mxu0 0
    %941 = vmatpush1.bf16.msra.mxu0 %v764
    %942 = vmatprep.subr.bf16.mxu0 0
    %943 = vmatpush1.bf16.msra.mxu0 %v765
    %944 = vmatprep.subr.bf16.mxu0 0
    %945 = vmatpush1.bf16.msra.mxu0 %v766
    %946 = vmatprep.subr.bf16.mxu0 0
    %947 = vmatpush1.bf16.msra.mxu0 %v767
    %948 = vmatprep.subr.bf16.mxu0 0
    %949 = vmatpush1.bf16.msra.mxu0 %v768
    %950 = vmatprep.subr.bf16.mxu0 0
    %951 = vmatpush1.bf16.msra.mxu0 %v769
    %952 = vmatprep.mubr.bf16.mxu0 %v360
    %953 = vmatmul.mubr.bf16.gmra.mrb[0].mxu0 %v359
    %v954 = vpop.f32.mrb[0].mxu0
    %v955 = vadd.f32 %v222, %v954
    %v956 = vpop.f32.mrb[0].mxu0
    %v957 = vpop.f32.mrb[0].mxu0
    %v958 = vadd.f32 %v222, %v957
    %v959 = vpop.f32.mrb[0].mxu0
    %960 = vmatprep.mubr.bf16.mxu0 %v370
    %961 = vmatmul.mubr.bf16.gmra.mrb[0].mxu0 %v369
    %v962 = vpop.f32.mrb[0].mxu0
    %v963 = vadd.f32 %v222, %v962
    %v964 = vpop.f32.mrb[0].mxu0
    %v965 = vpop.f32.mrb[0].mxu0
    %v966 = vadd.f32 %v222, %v965
    %v967 = vpop.f32.mrb[0].mxu0
    %968 = vmatprep.mubr.bf16.mxu0 %v380
    %969 = vmatmul.mubr.bf16.gmra.mrb[0].mxu0 %v379
    %v970 = vpop.f32.mrb[0].mxu0
    %v971 = vadd.f32 %v222, %v970
    %v972 = vpop.f32.mrb[0].mxu0
    %v973 = vpop.f32.mrb[0].mxu0
    %v974 = vadd.f32 %v222, %v973
    %v975 = vpop.f32.mrb[0].mxu0
    %976 = vmatprep.mubr.bf16.mxu0 %v390
    %977 = vmatmul.mubr.bf16.gmra.mrb[0].mxu0 %v389
    %v978 = vpop.f32.mrb[0].mxu0
    %v979 = vadd.f32 %v222, %v978
    %v980 = vpop.f32.mrb[0].mxu0
    %v981 = vpop.f32.mrb[0].mxu0
    %v982 = vadd.f32 %v222, %v981
    %v983 = vpop.f32.mrb[0].mxu0
    %984 = vmatprep.mubr.bf16.mxu0 %v400
    %985 = vmatmul.mubr.bf16.gmra.mrb[0].mxu0 %v399
    %v986 = vpop.f32.mrb[0].mxu0
    %v987 = vadd.f32 %v222, %v986
    %v988 = vpop.f32.mrb[0].mxu0
    %v989 = vpop.f32.mrb[0].mxu0
    %v990 = vpop.f32.mrb[0].mxu0
    %991 = vdwg.mxu0
    %992 = vmatprep.subr.bf16.mxu0 0
    %993 = vmatpush1.bf16.msra.mxu0 %v770
    %994 = vmatprep.subr.bf16.mxu0 0
    %995 = vmatpush1.bf16.msra.mxu0 %v771
    %996 = vmatprep.subr.bf16.mxu0 0
    %997 = vmatpush1.bf16.msra.mxu0 %v772
    %998 = vmatprep.subr.bf16.mxu0 0
    %999 = vmatpush1.bf16.msra.mxu0 %v773
    %1000 = vmatprep.subr.bf16.mxu0 0
    %1001 = vmatpush1.bf16.msra.mxu0 %v774
    %1002 = vmatprep.subr.bf16.mxu0 0
    %1003 = vmatpush1.bf16.msra.mxu0 %v775
    %1004 = vmatprep.subr.bf16.mxu0 0
    %1005 = vmatpush1.bf16.msra.mxu0 %v776
    %1006 = vmatprep.subr.bf16.mxu0 0
    %1007 = vmatpush1.bf16.msra.mxu0 %v777
    %1008 = vmatprep.subr.bf16.mxu0 0
    %1009 = vmatpush1.bf16.msra.mxu0 %v778
    %1010 = vmatprep.subr.bf16.mxu0 0
    %1011 = vmatpush1.bf16.msra.mxu0 %v779
    %1012 = vmatprep.subr.bf16.mxu0 0
    %1013 = vmatpush1.bf16.msra.mxu0 %v780
    %1014 = vmatprep.subr.bf16.mxu0 0
    %1015 = vmatpush1.bf16.msra.mxu0 %v781
    %1016 = vmatprep.subr.bf16.mxu0 0
    %1017 = vmatpush1.bf16.msra.mxu0 %v782
    %1018 = vmatprep.subr.bf16.mxu0 0
    %1019 = vmatpush1.bf16.msra.mxu0 %v783
    %1020 = vmatprep.subr.bf16.mxu0 0
    %1021 = vmatpush1.bf16.msra.mxu0 %v784
    %1022 = vmatprep.subr.bf16.mxu0 0
    %1023 = vmatpush1.bf16.msra.mxu0 %v785
    %1024 = vmatprep.mubr.bf16.mxu0 %v362
    %1025 = vmatmul.mubr.bf16.gmra.mrb[0].mxu0 %v361
    %v1026 = vpop.f32.mrb[0].mxu0
    %v1027 = vadd.f32 %v955, %v1026
    %v1028 = vpop.f32.mrb[0].mxu0
    %v1029 = vpop.f32.mrb[0].mxu0
    %v1030 = vadd.f32 %v958, %v1029
    %v1031 = vpop.f32.mrb[0].mxu0
    %1032 = vmatprep.mubr.bf16.mxu0 %v372
    %1033 = vmatmul.mubr.bf16.gmra.mrb[0].mxu0 %v371
    %v1034 = vpop.f32.mrb[0].mxu0
    %v1035 = vadd.f32 %v963, %v1034
    %v1036 = vpop.f32.mrb[0].mxu0
    %v1037 = vpop.f32.mrb[0].mxu0
    %v1038 = vadd.f32 %v966, %v1037
    %v1039 = vpop.f32.mrb[0].mxu0
    %1040 = vmatprep.mubr.bf16.mxu0 %v382
    %1041 = vmatmul.mubr.bf16.gmra.mrb[0].mxu0 %v381
    %v1042 = vpop.f32.mrb[0].mxu0
    %v1043 = vadd.f32 %v971, %v1042
    %v1044 = vpop.f32.mrb[0].mxu0
    %v1045 = vpop.f32.mrb[0].mxu0
    %v1046 = vadd.f32 %v974, %v1045
    %v1047 = vpop.f32.mrb[0].mxu0
    %1048 = vmatprep.mubr.bf16.mxu0 %v392
    %1049 = vmatmul.mubr.bf16.gmra.mrb[0].mxu0 %v391
    %v1050 = vpop.f32.mrb[0].mxu0
    %v1051 = vadd.f32 %v979, %v1050
    %v1052 = vpop.f32.mrb[0].mxu0
    %v1053 = vpop.f32.mrb[0].mxu0
    %v1054 = vadd.f32 %v982, %v1053
    %v1055 = vpop.f32.mrb[0].mxu0
    %1056 = vmatprep.mubr.bf16.mxu0 %v402
    %1057 = vmatmul.mubr.bf16.gmra.mrb[0].mxu0 %v401
    %v1058 = vpop.f32.mrb[0].mxu0
    %v1059 = vadd.f32 %v987, %v1058
    %v1060 = vpop.f32.mrb[0].mxu0
    %v1061 = vpop.f32.mrb[0].mxu0
    %v1062 = vpop.f32.mrb[0].mxu0
    %1063 = vdwg.mxu0
    %1064 = vmatprep.subr.bf16.mxu0 0
    %1065 = vmatpush1.bf16.msra.mxu0 %v786
    %1066 = vmatprep.subr.bf16.mxu0 0
    %1067 = vmatpush1.bf16.msra.mxu0 %v787
    %1068 = vmatprep.subr.bf16.mxu0 0
    %1069 = vmatpush1.bf16.msra.mxu0 %v788
    %1070 = vmatprep.subr.bf16.mxu0 0
    %1071 = vmatpush1.bf16.msra.mxu0 %v789
    %1072 = vmatprep.subr.bf16.mxu0 0
    %1073 = vmatpush1.bf16.msra.mxu0 %v790
    %1074 = vmatprep.subr.bf16.mxu0 0
    %1075 = vmatpush1.bf16.msra.mxu0 %v791
    %1076 = vmatprep.subr.bf16.mxu0 0
    %1077 = vmatpush1.bf16.msra.mxu0 %v792
    %1078 = vmatprep.subr.bf16.mxu0 0
    %1079 = vmatpush1.bf16.msra.mxu0 %v793
    %1080 = vmatprep.subr.bf16.mxu0 0
    %1081 = vmatpush1.bf16.msra.mxu0 %v794
    %1082 = vmatprep.subr.bf16.mxu0 0
    %1083 = vmatpush1.bf16.msra.mxu0 %v795
    %1084 = vmatprep.subr.bf16.mxu0 0
    %1085 = vmatpush1.bf16.msra.mxu0 %v796
    %1086 = vmatprep.subr.bf16.mxu0 0
    %1087 = vmatpush1.bf16.msra.mxu0 %v797
    %1088 = vmatprep.subr.bf16.mxu0 0
    %1089 = vmatpush1.bf16.msra.mxu0 %v798
    %1090 = vmatprep.subr.bf16.mxu0 0
    %1091 = vmatpush1.bf16.msra.mxu0 %v799
    %1092 = vmatprep.subr.bf16.mxu0 0
    %1093 = vmatpush1.bf16.msra.mxu0 %v800
    %1094 = vmatprep.subr.bf16.mxu0 0
    %1095 = vmatpush1.bf16.msra.mxu0 %v801
    %1096 = vmatprep.mubr.bf16.mxu0 %v364
    %1097 = vmatmul.mubr.bf16.gmra.mrb[0].mxu0 %v363
    %v1098 = vpop.f32.mrb[0].mxu0
    %v1099 = vadd.f32 %v1027, %v1098
    %v1100 = vpop.f32.mrb[0].mxu0
    %v1101 = vpop.f32.mrb[0].mxu0
    %v1102 = vadd.f32 %v1030, %v1101
    %v1103 = vpop.f32.mrb[0].mxu0
    %1104 = vmatprep.mubr.bf16.mxu0 %v374
    %1105 = vmatmul.mubr.bf16.gmra.mrb[0].mxu0 %v373
    %v1106 = vpop.f32.mrb[0].mxu0
    %v1107 = vadd.f32 %v1035, %v1106
    %v1108 = vpop.f32.mrb[0].mxu0
    %v1109 = vpop.f32.mrb[0].mxu0
    %v1110 = vadd.f32 %v1038, %v1109
    %v1111 = vpop.f32.mrb[0].mxu0
    %1112 = vmatprep.mubr.bf16.mxu0 %v384
    %1113 = vmatmul.mubr.bf16.gmra.mrb[0].mxu0 %v383
    %v1114 = vpop.f32.mrb[0].mxu0
    %v1115 = vadd.f32 %v1043, %v1114
    %v1116 = vpop.f32.mrb[0].mxu0
    %v1117 = vpop.f32.mrb[0].mxu0
    %v1118 = vadd.f32 %v1046, %v1117
    %v1119 = vpop.f32.mrb[0].mxu0
    %1120 = vmatprep.mubr.bf16.mxu0 %v394
    %1121 = vmatmul.mubr.bf16.gmra.mrb[0].mxu0 %v393
    %v1122 = vpop.f32.mrb[0].mxu0
    %v1123 = vadd.f32 %v1051, %v1122
    %v1124 = vpop.f32.mrb[0].mxu0
    %v1125 = vpop.f32.mrb[0].mxu0
    %v1126 = vadd.f32 %v1054, %v1125
    %v1127 = vpop.f32.mrb[0].mxu0
    %1128 = vmatprep.mubr.bf16.mxu0 %v404
    %1129 = vmatmul.mubr.bf16.gmra.mrb[0].mxu0 %v403
    %v1130 = vpop.f32.mrb[0].mxu0
    %v1131 = vadd.f32 %v1059, %v1130
    %v1132 = vpop.f32.mrb[0].mxu0
    %v1133 = vpop.f32.mrb[0].mxu0
    %v1134 = vpop.f32.mrb[0].mxu0
    %1135 = vdwg.mxu0
    %1136 = vmatprep.subr.bf16.mxu0 0
    %1137 = vmatpush1.bf16.msra.mxu0 %v802
    %1138 = vmatprep.subr.bf16.mxu0 0
    %1139 = vmatpush1.bf16.msra.mxu0 %v803
    %1140 = vmatprep.subr.bf16.mxu0 0
    %1141 = vmatpush1.bf16.msra.mxu0 %v804
    %1142 = vmatprep.subr.bf16.mxu0 0
    %1143 = vmatpush1.bf16.msra.mxu0 %v805
    %1144 = vmatprep.subr.bf16.mxu0 0
    %1145 = vmatpush1.bf16.msra.mxu0 %v806
    %1146 = vmatprep.subr.bf16.mxu0 0
    %1147 = vmatpush1.bf16.msra.mxu0 %v807
    %1148 = vmatprep.subr.bf16.mxu0 0
    %1149 = vmatpush1.bf16.msra.mxu0 %v808
    %1150 = vmatprep.subr.bf16.mxu0 0
    %1151 = vmatpush1.bf16.msra.mxu0 %v809
    %1152 = vmatprep.subr.bf16.mxu0 0
    %1153 = vmatpush1.bf16.msra.mxu0 %v810
    %1154 = vmatprep.subr.bf16.mxu0 0
    %1155 = vmatpush1.bf16.msra.mxu0 %v811
    %1156 = vmatprep.subr.bf16.mxu0 0
    %1157 = vmatpush1.bf16.msra.mxu0 %v812
    %1158 = vmatprep.subr.bf16.mxu0 0
    %1159 = vmatpush1.bf16.msra.mxu0 %v813
    %1160 = vmatprep.subr.bf16.mxu0 0
    %1161 = vmatpush1.bf16.msra.mxu0 %v814
    %1162 = vmatprep.subr.bf16.mxu0 0
    %1163 = vmatpush1.bf16.msra.mxu0 %v815
    %1164 = vmatprep.subr.bf16.mxu0 0
    %1165 = vmatpush1.bf16.msra.mxu0 %v816
    %1166 = vmatprep.subr.bf16.mxu0 0
    %1167 = vmatpush1.bf16.msra.mxu0 %v817
    %1168 = vmatprep.mubr.bf16.mxu0 %v366
    %1169 = vmatmul.mubr.bf16.gmra.mrb[0].mxu0 %v365
    %v1170 = vpop.f32.mrb[0].mxu0
    %v1171 = vadd.f32 %v1099, %v1170
    %v1172 = vpop.f32.mrb[0].mxu0
    %v1173 = vpop.f32.mrb[0].mxu0
    %v1174 = vadd.f32 %v1102, %v1173
    %v1175 = vpop.f32.mrb[0].mxu0
    %1176 = vmatprep.mubr.bf16.mxu0 %v376
    %1177 = vmatmul.mubr.bf16.gmra.mrb[0].mxu0 %v375
    %v1178 = vpop.f32.mrb[0].mxu0
    %v1179 = vadd.f32 %v1107, %v1178
    %v1180 = vpop.f32.mrb[0].mxu0
    %v1181 = vpop.f32.mrb[0].mxu0
    %v1182 = vadd.f32 %v1110, %v1181
    %v1183 = vpop.f32.mrb[0].mxu0
    %1184 = vmatprep.mubr.bf16.mxu0 %v386
    %1185 = vmatmul.mubr.bf16.gmra.mrb[0].mxu0 %v385
    %v1186 = vpop.f32.mrb[0].mxu0
    %v1187 = vadd.f32 %v1115, %v1186
    %v1188 = vpop.f32.mrb[0].mxu0
    %v1189 = vpop.f32.mrb[0].mxu0
    %v1190 = vadd.f32 %v1118, %v1189
    %v1191 = vpop.f32.mrb[0].mxu0
    %1192 = vmatprep.mubr.bf16.mxu0 %v396
    %1193 = vmatmul.mubr.bf16.gmra.mrb[0].mxu0 %v395
    %v1194 = vpop.f32.mrb[0].mxu0
    %v1195 = vadd.f32 %v1123, %v1194
    %v1196 = vpop.f32.mrb[0].mxu0
    %v1197 = vpop.f32.mrb[0].mxu0
    %v1198 = vadd.f32 %v1126, %v1197
    %v1199 = vpop.f32.mrb[0].mxu0
    %1200 = vmatprep.mubr.bf16.mxu0 %v406
    %1201 = vmatmul.mubr.bf16.gmra.mrb[0].mxu0 %v405
    %v1202 = vpop.f32.mrb[0].mxu0
    %v1203 = vadd.f32 %v1131, %v1202
    %v1204 = vpop.f32.mrb[0].mxu0
    %v1205 = vpop.f32.mrb[0].mxu0
    %v1206 = vpop.f32.mrb[0].mxu0
    %1207 = vdwg.mxu0
    %1208 = vmatprep.subr.bf16.mxu0 0
    %1209 = vmatpush1.bf16.msra.mxu0 %v818
    %1210 = vmatprep.subr.bf16.mxu0 0
    %1211 = vmatpush1.bf16.msra.mxu0 %v819
    %1212 = vmatprep.subr.bf16.mxu0 0
    %1213 = vmatpush1.bf16.msra.mxu0 %v820
    %1214 = vmatprep.subr.bf16.mxu0 0
    %1215 = vmatpush1.bf16.msra.mxu0 %v821
    %1216 = vmatprep.subr.bf16.mxu0 0
    %1217 = vmatpush1.bf16.msra.mxu0 %v822
    %1218 = vmatprep.subr.bf16.mxu0 0
    %1219 = vmatpush1.bf16.msra.mxu0 %v823
    %1220 = vmatprep.subr.bf16.mxu0 0
    %1221 = vmatpush1.bf16.msra.mxu0 %v824
    %1222 = vmatprep.subr.bf16.mxu0 0
    %1223 = vmatpush1.bf16.msra.mxu0 %v825
    %1224 = vmatprep.subr.bf16.mxu0 0
    %1225 = vmatpush1.bf16.msra.mxu0 %v826
    %1226 = vmatprep.subr.bf16.mxu0 0
    %1227 = vmatpush1.bf16.msra.mxu0 %v827
    %1228 = vmatprep.subr.bf16.mxu0 0
    %1229 = vmatpush1.bf16.msra.mxu0 %v828
    %1230 = vmatprep.subr.bf16.mxu0 0
    %1231 = vmatpush1.bf16.msra.mxu0 0
    %1232 = vmatprep.subr.bf16.mxu0 0
    %1233 = vmatpush1.bf16.msra.mxu0 0
    %1234 = vmatprep.subr.bf16.mxu0 0
    %1235 = vmatpush1.bf16.msra.mxu0 0
    %1236 = vmatprep.subr.bf16.mxu0 0
    %1237 = vmatpush1.bf16.msra.mxu0 0
    %1238 = vmatprep.subr.bf16.mxu0 0
    %1239 = vmatpush1.bf16.msra.mxu0 0
    %1240 = vmatprep.mubr.bf16.mxu0 %v906
    %1241 = vmatmul.mubr.bf16.gmra.mrb[0].mxu0 %v367
    %v1242 = vpop.f32.mrb[0].mxu0
    %v1243 = vadd.f32 %v1171, %v1242
    %v1244 = vpop.f32.mrb[0].mxu0
    %v1245 = vpop.f32.mrb[0].mxu0
    %v1246 = vadd.f32 %v1174, %v1245
    %v1247 = vpop.f32.mrb[0].mxu0
    %1248 = vmatprep.mubr.bf16.mxu0 %v909
    %1249 = vmatmul.mubr.bf16.gmra.mrb[0].mxu0 %v377
    %v1250 = vpop.f32.mrb[0].mxu0
    %v1251 = vadd.f32 %v1179, %v1250
    %v1252 = vpop.f32.mrb[0].mxu0
    %v1253 = vpop.f32.mrb[0].mxu0
    %v1254 = vadd.f32 %v1182, %v1253
    %v1255 = vpop.f32.mrb[0].mxu0
    %1256 = vmatprep.mubr.bf16.mxu0 %v912
    %1257 = vmatmul.mubr.bf16.gmra.mrb[0].mxu0 %v387
    %v1258 = vpop.f32.mrb[0].mxu0
    %v1259 = vadd.f32 %v1187, %v1258
    %v1260 = vpop.f32.mrb[0].mxu0
    %v1261 = vpop.f32.mrb[0].mxu0
    %v1262 = vadd.f32 %v1190, %v1261
    %v1263 = vpop.f32.mrb[0].mxu0
    %1264 = vmatprep.mubr.bf16.mxu0 %v915
    %1265 = vmatmul.mubr.bf16.gmra.mrb[0].mxu0 %v397
    %v1266 = vpop.f32.mrb[0].mxu0
    %v1267 = vadd.f32 %v1195, %v1266
    %v1268 = vpop.f32.mrb[0].mxu0
    %v1269 = vpop.f32.mrb[0].mxu0
    %v1270 = vadd.f32 %v1198, %v1269
    %v1271 = vpop.f32.mrb[0].mxu0
    %1272 = vmatprep.mubr.bf16.mxu0 %v918
    %1273 = vmatmul.mubr.bf16.gmra.mrb[0].mxu0 %v407
    %v1274 = vpop.f32.mrb[0].mxu0
    %v1275 = vadd.f32 %v1203, %v1274
    %v1276 = vpop.f32.mrb[0].mxu0
    %v1277 = vpop.f32.mrb[0].mxu0
    %v1278 = vpop.f32.mrb[0].mxu0
    %1279 = vdwg.mxu0
    %v1280 = vmax.f32 %v1243, 0.0
    %v1281 = vmax.f32 %v1246, 0.0
    %v1282 = vmax.f32 %v1251, 0.0
    %v1283 = vmax.f32 %v1254, 0.0
    %v1284 = vmax.f32 %v1259, 0.0
    %v1285 = vmax.f32 %v1262, 0.0
    %v1286 = vmax.f32 %v1267, 0.0
    %v1287 = vmax.f32 %v1270, 0.0
    %v1288 = vmax.f32 %v1275, 0.0
    %v1289 = vmax.f32 %v1280, %v1284
    %v1290 = vmax.f32 %v1281, %v1285
    %v1291 = vmax.f32 %v1282, %v1286
    %v1292 = vmax.f32 %v1283, %v1287
    %v1293 = vmax.f32 %v1289, %v1291
    %v1294 = vmax.f32 %v1290, %v1292
    %v1295 = vmax.f32 %v1293, %v1294
    %v1296 = vmax.f32 %v1295, %v1288
    %v1298 = vrot.slane %v1296, 4
    %v1300 = vmax.f32 %v1296, %v1298
    %v1302 = vrot.slane %v1300, 2
    %v1304 = vmax.f32 %v1300, %v1302
    %v1305 = vpack.c.bf16 %v1304, %v1304
    %v1306 = vld [vmem:[%s3] sm:$0xf]
    %v1307 = vld [vmem:[%s3 + $0x4] sm:$0xf]
    %v1308 = vld [vmem:[%s3 + $0x8] sm:$0xf]
    %v1309 = vld [vmem:[%s3 + $0xc] sm:$0xf]
    %v1310 = vld [vmem:[%s3 + $0x10] sm:$0xf]
    %v1311 = vld [vmem:[%s3 + $0x14] sm:$0xf]
    %v1312 = vld [vmem:[%s4] sm:$0x1]
    %v1314 = vlaneseq
    %v1315 = vshrl.u32 %v1314, 7
    %v1316 = vsub.s32 0, %v1315
    %v1317 = vrot.slane %v1312, %v1316
    %v1325 = vunpack.c.l.b16 %v1306
    %v1326 = vunpack.c.l.b16 %v1307
    %v1327 = vunpack.c.l.b16 %v1308
    %v1328 = vunpack.c.l.b16 %v1309
    %v1329 = vunpack.c.l.b16 %v1310
    %v1330 = vunpack.c.l.b16 %v1311
    %v1331 = vpack.c.b16 %v1326, %v1325
    %v1332 = vpack.c.b16 %v1328, %v1327
    %v1333 = vpack.c.b16 %v1330, %v1329
    %v1338 = vsel %vm904, %v1305, 0
    %1340 = vmatprep.subr.bf16.mxu0 0
    %1341 = vmatpush1.bf16.msra.mxu0 %v1331
    %1342 = vmatprep.subr.bf16.mxu0 0
    %1343 = vmatpush1.bf16.msra.mxu0 %v1332
    %1344 = vmatprep.subr.bf16.mxu0 0
    %1345 = vmatpush1.bf16.msra.mxu0 %v1333
    %1346 = vmatprep.subr.bf16.mxu0 0
    %1347 = vmatpush1.bf16.msra.mxu0 0
    %1348 = vmatprep.subr.bf16.mxu0 0
    %1349 = vmatpush1.bf16.msra.mxu0 0
    %1350 = vmatprep.subr.bf16.mxu0 0
    %1351 = vmatpush1.bf16.msra.mxu0 0
    %1352 = vmatprep.subr.bf16.mxu0 0
    %1353 = vmatpush1.bf16.msra.mxu0 0
    %1354 = vmatprep.subr.bf16.mxu0 0
    %1355 = vmatpush1.bf16.msra.mxu0 0
    %1356 = vmatprep.subr.bf16.mxu0 0
    %1357 = vmatpush1.bf16.msra.mxu0 0
    %1358 = vmatprep.subr.bf16.mxu0 0
    %1359 = vmatpush1.bf16.msra.mxu0 0
    %1360 = vmatprep.subr.bf16.mxu0 0
    %1361 = vmatpush1.bf16.msra.mxu0 0
    %1362 = vmatprep.subr.bf16.mxu0 0
    %1363 = vmatpush1.bf16.msra.mxu0 0
    %1364 = vmatprep.subr.bf16.mxu0 0
    %1365 = vmatpush1.bf16.msra.mxu0 0
    %1366 = vmatprep.subr.bf16.mxu0 0
    %1367 = vmatpush1.bf16.msra.mxu0 0
    %1368 = vmatprep.subr.bf16.mxu0 0
    %1369 = vmatpush1.bf16.msra.mxu0 0
    %1370 = vmatprep.subr.bf16.mxu0 0
    %1371 = vmatpush1.bf16.msra.mxu0 0
    %1372 = vmatprep.mubr.bf16.mxu0 0
    %1373 = vmatmul.mubr.bf16.gmra.mrb[0].mxu0 %v1338
    %v1374 = vpop.f32.mrb[0].mxu0
    %v1375 = vadd.f32 %v1317, %v1374
    %v1376 = vpop.f32.mrb[0].mxu0
    %v1377 = vpop.f32.mrb[0].mxu0
    %v1378 = vpop.f32.mrb[0].mxu0
    %1379 = vdwg.mxu0
    %v1380 = vmax.f32 %v1375, 0.0
    %vm1381 = vcmask 74752
    %1382 = vst.msk [vmem:[#allocation2] sm:$0x3] %vm1381, %v1380
    // Predicated region
    $region22: #{color_classifier_forward.1} parent=1 // pred_check
      _
    $region23: #{color_classifier_forward.1} parent=1 // pred_check_branch
      %1384 = sbr.rel (0) target = $region25
    $region24: #{color_classifier_forward.1} parent=1 // pred_region
      %s1386 = ssub.s32 32, 32
      %1387 = vsyncadd [#allocation3], %s1386
      %s1389 = sshll.u32 [#allocation2], 4
      %s1390 = int_to_ptr.vmem [resolvable:$true] %s1389
      %1392 = dma.vmem_to_hbm [thread:$0]  %s1390, 32, %s5, [#allocation3]
    $region25: #{color_classifier_forward.1} parent=1 // pred_fallthru
      _
    // Predicated region
    $region26: #{color_classifier_forward.1} parent=1 // pred_check
      _
    $region27: #{color_classifier_forward.1} parent=1 // pred_check_branch
      %1394 = sbr.rel (0) target = $region29
    $region28: #{color_classifier_forward.1} parent=1 // pred_region
      %1395 = dma.done [#allocation3], 32
    $region29: #{color_classifier_forward.1} parent=1 // pred_fallthru
      _
    %1396 = vsyncpa [#allocation3], 1

</llo_original>
